<compile_context>
chip_gen: v6e
topology: v6e:2x2x1
jax: 0.10.0
libtpu: 0.0.40
codegen_flags: <defaults>
</compile_context>

<pallas_src>
import numpy as np
import jax
import jax.numpy as jnp
from jax import lax
from jax.experimental import pallas as pl
from jax.experimental.pallas import tpu as pltpu


def _round_up(x, m):
    return ((x + m - 1) // m) * m


# --------------------------------------------------------------------------
# Portable on-chip PRNG: lowbias32 avalanche hash + Irwin-Hall(12) normal.
# --------------------------------------------------------------------------
def _hash_u32(x):
    x = x ^ (x >> 16)
    x = x * jnp.uint32(0x7FEB352D)
    x = x ^ (x >> 15)
    x = x * jnp.uint32(0x846CA68B)
    x = x ^ (x >> 16)
    return x


def _approx_std_normal(ctr):
    """Approx N(0,1) per element from a uint32 counter: sum of 12 U(0,1) - 6.

    6 chained hash draws, two 16-bit uniforms per draw.  Integer + FP VPU ops
    only (no log/sqrt/cos) -> no EUP pressure and no TPU-only primitives.
    """
    total = jnp.zeros(ctr.shape, jnp.float32)
    h = ctr
    for j in range(6):
        h = _hash_u32(h + jnp.uint32((0x9E3779B9 * (j + 1)) & 0xFFFFFFFF))
        lo = (h & jnp.uint32(0xFFFF)).astype(jnp.int32).astype(jnp.float32)
        hi = (h >> 16).astype(jnp.int32).astype(jnp.float32)
        total = total + lo + hi
    return total * jnp.float32(1.0 / 65536.0) - jnp.float32(6.0)


# --------------------------------------------------------------------------
# Fused sampler kernel factory.
#   grid = (pixel tiles [parallel],)
#   All T reverse steps run inside the body via lax.fori_loop; x_t is the
#   loop carry, so it never leaves vregs between steps.
# --------------------------------------------------------------------------
def _make_sampler(*, N, C, Cp, CCp, HID, T, TN, mean, std):
    assert N % TN == 0
    num_tiles = N // TN

    def kernel(scal_ref, seed_ref, x0_ref, cond_ref, w1x_ref, w1c_ref,
               bias_ref, w2_ref, b2_ref, out_ref):
        i = pl.program_id(0)                       # pixel tile

        # ---- step-invariant values (hoisted out of the T loop) -------------
        w1x = w1x_ref[...]                         # (HID, Cp)  bf16
        w2 = w2_ref[...]                           # (Cp, HID)  bf16
        b2 = b2_ref[...]                           # (Cp, 1)    f32
        # conditioning contribution to the hidden layer: computed ONCE per tile
        cond_contrib = jnp.dot(w1c_ref[...], cond_ref[...].astype(jnp.bfloat16),
                               preferred_element_type=jnp.float32)  # (HID, TN)

        # counter-based PRNG setup: one base per pixel tile
        seed_u = seed_ref[0].astype(jnp.uint32)
        base = seed_u + i.astype(jnp.uint32) * jnp.uint32(0x9E3779B9)
        row = lax.broadcasted_iota(jnp.uint32, (C, TN), 0)
        lane = lax.broadcasted_iota(jnp.uint32, (C, TN), 1)
        elem = row * jnp.uint32(0x85EBCA77) + lane * jnp.uint32(0xC2B2AE3D) + base
        if Cp > C:
            pad_zero = jnp.zeros((Cp - C, TN), jnp.float32)

        # ---- one reverse-diffusion step ------------------------------------
        def step(k, x):                            # k: 0..T-1, x: (Cp, TN) f32
            tt = T - 1 - k                         # diffusion time step

            # synthetic conditional eps-model (stand-in for self.model):
            #   h   = SiLU(W1x @ x + W1c @ cond + b1 + temb[t])
            #   eps = W2 @ h + b2
            h = (jnp.dot(w1x, x.astype(jnp.bfloat16),
                         preferred_element_type=jnp.float32)
                 + cond_contrib + bias_ref[tt])            # (HID, TN)
            h = h * (1.0 / (1.0 + jnp.exp(-h)))            # SiLU (f32)
            eps = (jnp.dot(w2, h.astype(jnp.bfloat16),
                           preferred_element_type=jnp.float32)
                   + b2)                                    # (Cp, TN)

            c1 = scal_ref[0, tt]                   # sqrt(1 / alpha_t)
            c2 = scal_ref[1, tt]                   # coeff2[t]
            sv = scal_ref[2, tt]                   # sqrt(posterior_var[t]); 0 at t==0

            # on-chip noise for the C real channels; pad rows get exact zeros
            ctr = elem + tt.astype(jnp.uint32) * jnp.uint32(0xA511E9B3)
            z = _approx_std_normal(ctr)            # (C, TN)
            if Cp > C:
                noise = jnp.concatenate([z, pad_zero], axis=0)
            else:
                noise = z                          # (Cp, TN)

            # x_{t-1} = coeff1 * x_t - coeff2 * eps + sqrt(var) * noise
            return c1 * x - c2 * eps + sv * noise

        # NOTE: all T steps run inside this single grid invocation, so the
        # state-carry does not depend on grid ordering / scratch persistence.
        x_final = lax.fori_loop(0, T, step, x0_ref[...])

        # de-normalized channel 0:  x_0 = x_t[:, 0] * std + mean
        out_ref[...] = x_final[0:1, :] * std + mean

    grid_spec = pltpu.PrefetchScalarGridSpec(
        num_scalar_prefetch=2,              # (3, T) schedule scalars + (1,) seed
        grid=(num_tiles,),
        in_specs=[
            pl.BlockSpec((Cp, TN), lambda i, scal, seed: (0, i)),        # x_T (padded)
            pl.BlockSpec((CCp, TN), lambda i, scal, seed: (0, i)),       # cond (padded)
            pl.BlockSpec((HID, Cp), lambda i, scal, seed: (0, 0)),       # W1x (bf16)
            pl.BlockSpec((HID, CCp), lambda i, scal, seed: (0, 0)),      # W1c (bf16)
            pl.BlockSpec((T, HID, 1), lambda i, scal, seed: (0, 0, 0)),  # b1 + temb
            pl.BlockSpec((Cp, HID), lambda i, scal, seed: (0, 0)),       # W2 (bf16)
            pl.BlockSpec((Cp, 1), lambda i, scal, seed: (0, 0)),         # b2
        ],
        out_specs=pl.BlockSpec((1, TN), lambda i, scal, seed: (0, i)),
    )

    return pl.pallas_call(
        kernel,
        out_shape=jax.ShapeDtypeStruct((1, N), jnp.float32),
        grid_spec=grid_spec,
        compiler_params=pltpu.CompilerParams(
            dimension_semantics=("parallel",)),
    )


def _pick_tile(N, max_tn=512):
    # Lane-dense tiles (multiple of 128), capped at 512 to keep the per-step
    # hidden activations within the vreg file; prefer >= 2 tiles so the
    # "parallel" axis can shard across TensorCores (v7x megacore).
    for tn in range(min(N // 2, max_tn), 127, -1):
        if tn % 128 == 0 and N % tn == 0:
            return tn
    return N


# --------------------------------------------------------------------------
# Diffusion schedule (mirrors the PyTorch __init__, computed in float64).
# --------------------------------------------------------------------------
def make_schedule(beta_1, beta_T, T):
    betas = np.linspace(beta_1, beta_T, T, dtype=np.float64)
    alphas = 1.0 - betas
    alphas_bar = np.cumprod(alphas)
    alphas_bar_prev = np.concatenate([[1.0], alphas_bar])[:T]
    coeff1 = np.sqrt(1.0 / alphas)
    coeff2 = coeff1 * (1.0 - alphas) / np.sqrt(1.0 - alphas_bar)
    posterior_var = betas * (1.0 - alphas_bar_prev) / (1.0 - alphas_bar)
    return coeff1, coeff2, posterior_var


# --------------------------------------------------------------------------
# Full sampler.  Inputs follow the PyTorch NCHW convention; output is
# (B, H, W), i.e. x_t[:, 0, :, :] * std + mean.
# --------------------------------------------------------------------------
def gaussian_diffusion_sampler_cond(x_T, stft_features, params, schedule,
                                    mean, std, key):
    coeff1, coeff2, posterior_var = schedule
    T = int(coeff1.shape[0])
    B, C, H, W = x_T.shape
    CC = stft_features.shape[1]
    HID = params["w1x"].shape[1]
    N = B * H * W
    TN = _pick_tile(N)
    Cp = _round_up(C, 8)
    CCp = _round_up(CC, 8)

    # NCHW -> lane-dense (channels on sublanes, pixels on lanes): (C, B*H*W),
    # padded to 8 sublanes so every hot-loop tile is a full unmasked vreg.
    x0 = jnp.transpose(x_T, (1, 0, 2, 3)).reshape(C, N).astype(jnp.float32)
    cond = jnp.transpose(stft_features, (1, 0, 2, 3)).reshape(CC, N).astype(jnp.float32)
    x0 = jnp.pad(x0, ((0, Cp - C), (0, 0)))
    cond = jnp.pad(cond, ((0, CCp - CC), (0, 0)))

    # Transposed / zero-padded model weights (bf16 MXU operands).
    w1x = jnp.pad(params["w1x"].T.astype(jnp.float32),
                  ((0, 0), (0, Cp - C))).astype(jnp.bfloat16)        # (HID, Cp)
    w1c = jnp.pad(params["w1c"].T.astype(jnp.float32),
                  ((0, 0), (0, CCp - CC))).astype(jnp.bfloat16)      # (HID, CCp)
    w2 = jnp.pad(params["w2"].T.astype(jnp.float32),
                 ((0, Cp - C), (0, 0))).astype(jnp.bfloat16)         # (Cp, HID)
    b2 = jnp.pad(params["b2"].reshape(C, 1).astype(jnp.float32),
                 ((0, Cp - C), (0, 0)))                              # (Cp, 1)
    bias = (params["b1"].reshape(1, HID)
            + params["temb"]).reshape(T, HID, 1).astype(jnp.float32)  # (T, HID, 1)

    # Per-timestep scalars -> (3, T) SMEM scalar-prefetch table.
    sv = np.sqrt(np.maximum(np.asarray(posterior_var, dtype=np.float64), 0.0))
    sv[0] = 0.0                          # original code adds no noise at t == 0
    scal = jnp.asarray(np.stack([coeff1, coeff2, sv], axis=0), dtype=jnp.float32)

    seed = jax.random.randint(key, (1,), 0, np.iinfo(np.int32).max, dtype=jnp.int32)

    sampler = _make_sampler(N=N, C=C, Cp=Cp, CCp=CCp, HID=HID, T=T, TN=TN,
                            mean=float(mean), std=float(std))
    out = sampler(scal, seed, x0, cond, w1x, w1c, bias, w2, b2)      # (1, N)

    # pixel index ordering is b*H*W + h*W + w  ->  (B, H, W)
    return out.reshape(B, H, W)


if __name__ == "__main__":
    # small, deterministic setup
    B, C, H, W = 2, 4, 16, 16     # x_T shape (NCHW)
    CC = 4                        # stft_features channels
    HID = 32                      # synthetic model hidden width
    T = 8                         # diffusion steps
    beta_1, beta_T = 1e-4, 0.02
    mean, std = 0.5, 0.2

    root = jax.random.PRNGKey(0)
    k_x, k_c, k_w1x, k_w1c, k_w2, k_temb, k_noise = jax.random.split(root, 7)

    x_T = jax.random.normal(k_x, (B, C, H, W), dtype=jnp.float32)
    stft_features = jax.random.normal(k_c, (B, CC, H, W), dtype=jnp.float32)

    params = {
        "w1x": 0.05 * jax.random.normal(k_w1x, (C, HID), dtype=jnp.float32),
        "w1c": 0.05 * jax.random.normal(k_w1c, (CC, HID), dtype=jnp.float32),
        "b1": jnp.zeros((1, HID), dtype=jnp.float32),
        "temb": 0.05 * jax.random.normal(k_temb, (T, HID), dtype=jnp.float32),
        "w2": 0.05 * jax.random.normal(k_w2, (HID, C), dtype=jnp.float32),
        "b2": jnp.zeros((1, C), dtype=jnp.float32),
    }

    schedule = make_schedule(beta_1, beta_T, T)

    x_0 = gaussian_diffusion_sampler_cond(
        x_T, stft_features, params, schedule, mean, std, k_noise)
    x_0 = jax.block_until_ready(x_0)

    assert x_0.shape == (B, H, W), x_0.shape
    assert bool(jnp.all(jnp.isfinite(x_0)))
    print("KERNEL_OK")
</pallas_src>

<mosaic_0001>
module attributes {stable_mosaic.version = 11 : i64} {
  func.func @kernel(%arg0: i32, %arg1: memref<3x8xf32, #tpu.memory_space<smem>>, %arg2: memref<1xi32, #tpu.memory_space<smem>>, %arg3: memref<8x256xf32, #tpu.memory_space<vmem>>, %arg4: memref<8x256xf32, #tpu.memory_space<vmem>>, %arg5: memref<32x8xbf16, #tpu.memory_space<vmem>>, %arg6: memref<32x8xbf16, #tpu.memory_space<vmem>>, %arg7: memref<8x32x1xf32, #tpu.memory_space<vmem>>, %arg8: memref<8x32xbf16, #tpu.memory_space<vmem>>, %arg9: memref<8x1xf32, #tpu.memory_space<vmem>>, %arg10: memref<1x256xf32, #tpu.memory_space<vmem>>) attributes {dimension_semantics = [#tpu.dimension_semantics<parallel>], iteration_bounds = array<i64: 2>, scalar_prefetch = 2 : i64, scratch_operands = 0 : i64, tpu.core_type = #tpu.core_type<tc>, window_params = [{transform_indices = @transform_0, window_bounds = array<i64: 8, 256>}, {transform_indices = @transform_1, window_bounds = array<i64: 8, 256>}, {pipeline_mode = #tpu.pipeline_mode<synchronous>, transform_indices = @transform_2, window_bounds = array<i64: 32, 8>}, {pipeline_mode = #tpu.pipeline_mode<synchronous>, transform_indices = @transform_3, window_bounds = array<i64: 32, 8>}, {pipeline_mode = #tpu.pipeline_mode<synchronous>, transform_indices = @transform_4, window_bounds = array<i64: 8, 32, 1>}, {pipeline_mode = #tpu.pipeline_mode<synchronous>, transform_indices = @transform_5, window_bounds = array<i64: 8, 32>}, {pipeline_mode = #tpu.pipeline_mode<synchronous>, transform_indices = @transform_6, window_bounds = array<i64: 8, 1>}, {transform_indices = @transform_7, window_bounds = array<i64: 1, 256>}]} {
    %c0 = arith.constant 0 : index
    %c0_0 = arith.constant 0 : index
    %0 = vector.load %arg5[%c0, %c0_0] : memref<32x8xbf16, #tpu.memory_space<vmem>>, vector<32x8xbf16>
    %c0_1 = arith.constant 0 : index
    %c0_2 = arith.constant 0 : index
    %1 = vector.load %arg8[%c0_1, %c0_2] : memref<8x32xbf16, #tpu.memory_space<vmem>>, vector<8x32xbf16>
    %c0_3 = arith.constant 0 : index
    %c0_4 = arith.constant 0 : index
    %2 = vector.load %arg9[%c0_3, %c0_4] : memref<8x1xf32, #tpu.memory_space<vmem>>, vector<8x1xf32>
    %c0_5 = arith.constant 0 : index
    %c0_6 = arith.constant 0 : index
    %3 = vector.load %arg6[%c0_5, %c0_6] : memref<32x8xbf16, #tpu.memory_space<vmem>>, vector<32x8xbf16>
    %c0_7 = arith.constant 0 : index
    %c0_8 = arith.constant 0 : index
    %4 = vector.load %arg4[%c0_7, %c0_8] : memref<8x256xf32, #tpu.memory_space<vmem>>, vector<8x256xf32>
    %5 = arith.truncf %4 : vector<8x256xf32> to vector<8x256xbf16>
    %cst = arith.constant dense<0.000000e+00> : vector<32x256xf32>
    %6 = tpu.matmul %3, %5, %cst {dimension_numbers = #tpu.dot_dimension_numbers<[1], [0], [0], [1], [0, 0, 1, 1], [], []>} : vector<32x8xbf16>, vector<8x256xbf16>, vector<32x256xf32> -> vector<32x256xf32>
    %c0_9 = arith.constant 0 : index
    %7 = memref.load %arg2[%c0_9] : memref<1xi32, #tpu.memory_space<smem>>
    %c-1640531527_i32 = arith.constant -1640531527 : i32
    %8 = arith.muli %arg0, %c-1640531527_i32 : i32
    %9 = arith.addi %7, %8 : i32
    %10 = tpu.iota {dimensions = array<i32: 0>} : vector<4x256xi32>
    %11 = tpu.iota {dimensions = array<i32: 1>} : vector<4x256xi32>
    %c-2048144777_i32 = arith.constant -2048144777 : i32
    %12 = vector.broadcast %c-2048144777_i32 : i32 to vector<4x256xi32>
    %13 = arith.muli %10, %12 : vector<4x256xi32>
    %c-1028477379_i32 = arith.constant -1028477379 : i32
    %14 = vector.broadcast %c-1028477379_i32 : i32 to vector<4x256xi32>
    %15 = arith.muli %11, %14 : vector<4x256xi32>
    %16 = arith.addi %13, %15 : vector<4x256xi32>
    %17 = vector.broadcast %9 : i32 to vector<4x256xi32>
    %18 = arith.addi %16, %17 : vector<4x256xi32>
    %cst_10 = arith.constant 0.000000e+00 : f32
    %19 = vector.broadcast %cst_10 : f32 to vector<4x256xf32>
    %c0_11 = arith.constant 0 : index
    %c0_12 = arith.constant 0 : index
    %20 = vector.load %arg3[%c0_11, %c0_12] : memref<8x256xf32, #tpu.memory_space<vmem>>, vector<8x256xf32>
    %c0_i32 = arith.constant 0 : i32
    %c8_i32 = arith.constant 8 : i32
    %21 = arith.addi %c0_i32, %c8_i32 : i32
    %c1_i32 = arith.constant 1 : i32
    %22 = scf.for %arg11 = %c0_i32 to %21 step %c1_i32 iter_args(%arg12 = %20) -> (vector<8x256xf32>)  : i32 {
      %c7_i32 = arith.constant 7 : i32
      %29 = arith.subi %c7_i32, %arg11 : i32
      %30 = arith.truncf %arg12 : vector<8x256xf32> to vector<8x256xbf16>
      %cst_18 = arith.constant dense<0.000000e+00> : vector<32x256xf32>
      %31 = tpu.matmul %0, %30, %cst_18 {dimension_numbers = #tpu.dot_dimension_numbers<[1], [0], [0], [1], [0, 0, 1, 1], [], []>} : vector<32x8xbf16>, vector<8x256xbf16>, vector<32x256xf32> -> vector<32x256xf32>
      %32 = arith.addf %31, %6 : vector<32x256xf32>
      %33 = arith.index_cast %29 : i32 to index
      %c0_19 = arith.constant 0 : index
      %c0_20 = arith.constant 0 : index
      %34 = vector.load %arg7[%33, %c0_19, %c0_20] : memref<8x32x1xf32, #tpu.memory_space<vmem>>, vector<1x32x1xf32>
      %35 = vector.shape_cast %34 : vector<1x32x1xf32> to vector<32x1xf32>
      %36 = vector.broadcast %35 : vector<32x1xf32> to vector<32x256xf32>
      %37 = arith.addf %32, %36 : vector<32x256xf32>
      %cst_21 = arith.constant 0.000000e+00 : f32
      %38 = vector.broadcast %cst_21 : f32 to vector<32x256xf32>
      %39 = arith.subf %38, %37 : vector<32x256xf32>
      %40 = math.exp %39 : vector<32x256xf32>
      %cst_22 = arith.constant 1.000000e+00 : f32
      %41 = vector.broadcast %cst_22 : f32 to vector<32x256xf32>
      %42 = arith.addf %41, %40 : vector<32x256xf32>
      %cst_23 = arith.constant 1.000000e+00 : f32
      %43 = vector.broadcast %cst_23 : f32 to vector<32x256xf32>
      %44 = arith.divf %43, %42 : vector<32x256xf32>
      %45 = arith.mulf %37, %44 : vector<32x256xf32>
      %46 = arith.truncf %45 : vector<32x256xf32> to vector<32x256xbf16>
      %cst_24 = arith.constant dense<0.000000e+00> : vector<8x256xf32>
      %47 = tpu.matmul %1, %46, %cst_24 {dimension_numbers = #tpu.dot_dimension_numbers<[1], [0], [0], [1], [0, 0, 1, 1], [], []>} : vector<8x32xbf16>, vector<32x256xbf16>, vector<8x256xf32> -> vector<8x256xf32>
      %48 = vector.broadcast %2 : vector<8x1xf32> to vector<8x256xf32>
      %49 = arith.addf %47, %48 : vector<8x256xf32>
      %c0_25 = arith.constant 0 : index
      %50 = arith.index_cast %29 : i32 to index
      %51 = memref.load %arg1[%c0_25, %50] : memref<3x8xf32, #tpu.memory_space<smem>>
      %c1 = arith.constant 1 : index
      %52 = arith.index_cast %29 : i32 to index
      %53 = memref.load %arg1[%c1, %52] : memref<3x8xf32, #tpu.memory_space<smem>>
      %c2 = arith.constant 2 : index
      %54 = arith.index_cast %29 : i32 to index
      %55 = memref.load %arg1[%c2, %54] : memref<3x8xf32, #tpu.memory_space<smem>>
      %c-1525552717_i32 = arith.constant -1525552717 : i32
      %56 = arith.muli %29, %c-1525552717_i32 : i32
      %57 = vector.broadcast %56 : i32 to vector<4x256xi32>
      %58 = arith.addi %18, %57 : vector<4x256xi32>
      %cst_26 = arith.constant 0.000000e+00 : f32
      %59 = vector.broadcast %cst_26 : f32 to vector<4x256xf32>
      %c-1640531527_i32_27 = arith.constant -1640531527 : i32
      %60 = vector.broadcast %c-1640531527_i32_27 : i32 to vector<4x256xi32>
      %61 = arith.addi %58, %60 : vector<4x256xi32>
      %c16_i32 = arith.constant 16 : i32
      %62 = vector.broadcast %c16_i32 : i32 to vector<4x256xi32>
      %63 = arith.shrui %61, %62 : vector<4x256xi32>
      %64 = arith.xori %61, %63 : vector<4x256xi32>
      %c2146121005_i32 = arith.constant 2146121005 : i32
      %65 = vector.broadcast %c2146121005_i32 : i32 to vector<4x256xi32>
      %66 = arith.muli %64, %65 : vector<4x256xi32>
      %c15_i32 = arith.constant 15 : i32
      %67 = vector.broadcast %c15_i32 : i32 to vector<4x256xi32>
      %68 = arith.shrui %66, %67 : vector<4x256xi32>
      %69 = arith.xori %66, %68 : vector<4x256xi32>
      %c-2073254261_i32 = arith.constant -2073254261 : i32
      %70 = vector.broadcast %c-2073254261_i32 : i32 to vector<4x256xi32>
      %71 = arith.muli %69, %70 : vector<4x256xi32>
      %c16_i32_28 = arith.constant 16 : i32
      %72 = vector.broadcast %c16_i32_28 : i32 to vector<4x256xi32>
      %73 = arith.shrui %71, %72 : vector<4x256xi32>
      %74 = arith.xori %71, %73 : vector<4x256xi32>
      %c65535_i32 = arith.constant 65535 : i32
      %75 = vector.broadcast %c65535_i32 : i32 to vector<4x256xi32>
      %76 = arith.andi %74, %75 : vector<4x256xi32>
      %77 = arith.sitofp %76 : vector<4x256xi32> to vector<4x256xf32>
      %c16_i32_29 = arith.constant 16 : i32
      %78 = vector.broadcast %c16_i32_29 : i32 to vector<4x256xi32>
      %79 = arith.shrui %74, %78 : vector<4x256xi32>
      %80 = arith.sitofp %79 : vector<4x256xi32> to vector<4x256xf32>
      %81 = arith.addf %59, %77 : vector<4x256xf32>
      %82 = arith.addf %81, %80 : vector<4x256xf32>
      %c1013904242_i32 = arith.constant 1013904242 : i32
      %83 = vector.broadcast %c1013904242_i32 : i32 to vector<4x256xi32>
      %84 = arith.addi %74, %83 : vector<4x256xi32>
      %c16_i32_30 = arith.constant 16 : i32
      %85 = vector.broadcast %c16_i32_30 : i32 to vector<4x256xi32>
      %86 = arith.shrui %84, %85 : vector<4x256xi32>
      %87 = arith.xori %84, %86 : vector<4x256xi32>
      %c2146121005_i32_31 = arith.constant 2146121005 : i32
      %88 = vector.broadcast %c2146121005_i32_31 : i32 to vector<4x256xi32>
      %89 = arith.muli %87, %88 : vector<4x256xi32>
      %c15_i32_32 = arith.constant 15 : i32
      %90 = vector.broadcast %c15_i32_32 : i32 to vector<4x256xi32>
      %91 = arith.shrui %89, %90 : vector<4x256xi32>
      %92 = arith.xori %89, %91 : vector<4x256xi32>
      %c-2073254261_i32_33 = arith.constant -2073254261 : i32
      %93 = vector.broadcast %c-2073254261_i32_33 : i32 to vector<4x256xi32>
      %94 = arith.muli %92, %93 : vector<4x256xi32>
      %c16_i32_34 = arith.constant 16 : i32
      %95 = vector.broadcast %c16_i32_34 : i32 to vector<4x256xi32>
      %96 = arith.shrui %94, %95 : vector<4x256xi32>
      %97 = arith.xori %94, %96 : vector<4x256xi32>
      %c65535_i32_35 = arith.constant 65535 : i32
      %98 = vector.broadcast %c65535_i32_35 : i32 to vector<4x256xi32>
      %99 = arith.andi %97, %98 : vector<4x256xi32>
      %100 = arith.sitofp %99 : vector<4x256xi32> to vector<4x256xf32>
      %c16_i32_36 = arith.constant 16 : i32
      %101 = vector.broadcast %c16_i32_36 : i32 to vector<4x256xi32>
      %102 = arith.shrui %97, %101 : vector<4x256xi32>
      %103 = arith.sitofp %102 : vector<4x256xi32> to vector<4x256xf32>
      %104 = arith.addf %82, %100 : vector<4x256xf32>
      %105 = arith.addf %104, %103 : vector<4x256xf32>
      %c-626627285_i32 = arith.constant -626627285 : i32
      %106 = vector.broadcast %c-626627285_i32 : i32 to vector<4x256xi32>
      %107 = arith.addi %97, %106 : vector<4x256xi32>
      %c16_i32_37 = arith.constant 16 : i32
      %108 = vector.broadcast %c16_i32_37 : i32 to vector<4x256xi32>
      %109 = arith.shrui %107, %108 : vector<4x256xi32>
      %110 = arith.xori %107, %109 : vector<4x256xi32>
      %c2146121005_i32_38 = arith.constant 2146121005 : i32
      %111 = vector.broadcast %c2146121005_i32_38 : i32 to vector<4x256xi32>
      %112 = arith.muli %110, %111 : vector<4x256xi32>
      %c15_i32_39 = arith.constant 15 : i32
      %113 = vector.broadcast %c15_i32_39 : i32 to vector<4x256xi32>
      %114 = arith.shrui %112, %113 : vector<4x256xi32>
      %115 = arith.xori %112, %114 : vector<4x256xi32>
      %c-2073254261_i32_40 = arith.constant -2073254261 : i32
      %116 = vector.broadcast %c-2073254261_i32_40 : i32 to vector<4x256xi32>
      %117 = arith.muli %115, %116 : vector<4x256xi32>
      %c16_i32_41 = arith.constant 16 : i32
      %118 = vector.broadcast %c16_i32_41 : i32 to vector<4x256xi32>
      %119 = arith.shrui %117, %118 : vector<4x256xi32>
      %120 = arith.xori %117, %119 : vector<4x256xi32>
      %c65535_i32_42 = arith.constant 65535 : i32
      %121 = vector.broadcast %c65535_i32_42 : i32 to vector<4x256xi32>
      %122 = arith.andi %120, %121 : vector<4x256xi32>
      %123 = arith.sitofp %122 : vector<4x256xi32> to vector<4x256xf32>
      %c16_i32_43 = arith.constant 16 : i32
      %124 = vector.broadcast %c16_i32_43 : i32 to vector<4x256xi32>
      %125 = arith.shrui %120, %124 : vector<4x256xi32>
      %126 = arith.sitofp %125 : vector<4x256xi32> to vector<4x256xf32>
      %127 = arith.addf %105, %123 : vector<4x256xf32>
      %128 = arith.addf %127, %126 : vector<4x256xf32>
      %c2027808484_i32 = arith.constant 2027808484 : i32
      %129 = vector.broadcast %c2027808484_i32 : i32 to vector<4x256xi32>
      %130 = arith.addi %120, %129 : vector<4x256xi32>
      %c16_i32_44 = arith.constant 16 : i32
      %131 = vector.broadcast %c16_i32_44 : i32 to vector<4x256xi32>
      %132 = arith.shrui %130, %131 : vector<4x256xi32>
      %133 = arith.xori %130, %132 : vector<4x256xi32>
      %c2146121005_i32_45 = arith.constant 2146121005 : i32
      %134 = vector.broadcast %c2146121005_i32_45 : i32 to vector<4x256xi32>
      %135 = arith.muli %133, %134 : vector<4x256xi32>
      %c15_i32_46 = arith.constant 15 : i32
      %136 = vector.broadcast %c15_i32_46 : i32 to vector<4x256xi32>
      %137 = arith.shrui %135, %136 : vector<4x256xi32>
      %138 = arith.xori %135, %137 : vector<4x256xi32>
      %c-2073254261_i32_47 = arith.constant -2073254261 : i32
      %139 = vector.broadcast %c-2073254261_i32_47 : i32 to vector<4x256xi32>
      %140 = arith.muli %138, %139 : vector<4x256xi32>
      %c16_i32_48 = arith.constant 16 : i32
      %141 = vector.broadcast %c16_i32_48 : i32 to vector<4x256xi32>
      %142 = arith.shrui %140, %141 : vector<4x256xi32>
      %143 = arith.xori %140, %142 : vector<4x256xi32>
      %c65535_i32_49 = arith.constant 65535 : i32
      %144 = vector.broadcast %c65535_i32_49 : i32 to vector<4x256xi32>
      %145 = arith.andi %143, %144 : vector<4x256xi32>
      %146 = arith.sitofp %145 : vector<4x256xi32> to vector<4x256xf32>
      %c16_i32_50 = arith.constant 16 : i32
      %147 = vector.broadcast %c16_i32_50 : i32 to vector<4x256xi32>
      %148 = arith.shrui %143, %147 : vector<4x256xi32>
      %149 = arith.sitofp %148 : vector<4x256xi32> to vector<4x256xf32>
      %150 = arith.addf %128, %146 : vector<4x256xf32>
      %151 = arith.addf %150, %149 : vector<4x256xf32>
      %c387276957_i32 = arith.constant 387276957 : i32
      %152 = vector.broadcast %c387276957_i32 : i32 to vector<4x256xi32>
      %153 = arith.addi %143, %152 : vector<4x256xi32>
      %c16_i32_51 = arith.constant 16 : i32
      %154 = vector.broadcast %c16_i32_51 : i32 to vector<4x256xi32>
      %155 = arith.shrui %153, %154 : vector<4x256xi32>
      %156 = arith.xori %153, %155 : vector<4x256xi32>
      %c2146121005_i32_52 = arith.constant 2146121005 : i32
      %157 = vector.broadcast %c2146121005_i32_52 : i32 to vector<4x256xi32>
      %158 = arith.muli %156, %157 : vector<4x256xi32>
      %c15_i32_53 = arith.constant 15 : i32
      %159 = vector.broadcast %c15_i32_53 : i32 to vector<4x256xi32>
      %160 = arith.shrui %158, %159 : vector<4x256xi32>
      %161 = arith.xori %158, %160 : vector<4x256xi32>
      %c-2073254261_i32_54 = arith.constant -2073254261 : i32
      %162 = vector.broadcast %c-2073254261_i32_54 : i32 to vector<4x256xi32>
      %163 = arith.muli %161, %162 : vector<4x256xi32>
      %c16_i32_55 = arith.constant 16 : i32
      %164 = vector.broadcast %c16_i32_55 : i32 to vector<4x256xi32>
      %165 = arith.shrui %163, %164 : vector<4x256xi32>
      %166 = arith.xori %163, %165 : vector<4x256xi32>
      %c65535_i32_56 = arith.constant 65535 : i32
      %167 = vector.broadcast %c65535_i32_56 : i32 to vector<4x256xi32>
      %168 = arith.andi %166, %167 : vector<4x256xi32>
      %169 = arith.sitofp %168 : vector<4x256xi32> to vector<4x256xf32>
      %c16_i32_57 = arith.constant 16 : i32
      %170 = vector.broadcast %c16_i32_57 : i32 to vector<4x256xi32>
      %171 = arith.shrui %166, %170 : vector<4x256xi32>
      %172 = arith.sitofp %171 : vector<4x256xi32> to vector<4x256xf32>
      %173 = arith.addf %151, %169 : vector<4x256xf32>
      %174 = arith.addf %173, %172 : vector<4x256xf32>
      %c-1253254570_i32 = arith.constant -1253254570 : i32
      %175 = vector.broadcast %c-1253254570_i32 : i32 to vector<4x256xi32>
      %176 = arith.addi %166, %175 : vector<4x256xi32>
      %c16_i32_58 = arith.constant 16 : i32
      %177 = vector.broadcast %c16_i32_58 : i32 to vector<4x256xi32>
      %178 = arith.shrui %176, %177 : vector<4x256xi32>
      %179 = arith.xori %176, %178 : vector<4x256xi32>
      %c2146121005_i32_59 = arith.constant 2146121005 : i32
      %180 = vector.broadcast %c2146121005_i32_59 : i32 to vector<4x256xi32>
      %181 = arith.muli %179, %180 : vector<4x256xi32>
      %c15_i32_60 = arith.constant 15 : i32
      %182 = vector.broadcast %c15_i32_60 : i32 to vector<4x256xi32>
      %183 = arith.shrui %181, %182 : vector<4x256xi32>
      %184 = arith.xori %181, %183 : vector<4x256xi32>
      %c-2073254261_i32_61 = arith.constant -2073254261 : i32
      %185 = vector.broadcast %c-2073254261_i32_61 : i32 to vector<4x256xi32>
      %186 = arith.muli %184, %185 : vector<4x256xi32>
      %c16_i32_62 = arith.constant 16 : i32
      %187 = vector.broadcast %c16_i32_62 : i32 to vector<4x256xi32>
      %188 = arith.shrui %186, %187 : vector<4x256xi32>
      %189 = arith.xori %186, %188 : vector<4x256xi32>
      %c65535_i32_63 = arith.constant 65535 : i32
      %190 = vector.broadcast %c65535_i32_63 : i32 to vector<4x256xi32>
      %191 = arith.andi %189, %190 : vector<4x256xi32>
      %192 = arith.sitofp %191 : vector<4x256xi32> to vector<4x256xf32>
      %c16_i32_64 = arith.constant 16 : i32
      %193 = vector.broadcast %c16_i32_64 : i32 to vector<4x256xi32>
      %194 = arith.shrui %189, %193 : vector<4x256xi32>
      %195 = arith.sitofp %194 : vector<4x256xi32> to vector<4x256xf32>
      %196 = arith.addf %174, %192 : vector<4x256xf32>
      %197 = arith.addf %196, %195 : vector<4x256xf32>
      %cst_65 = arith.constant 1.52587891E-5 : f32
      %198 = vector.broadcast %cst_65 : f32 to vector<4x256xf32>
      %199 = arith.mulf %197, %198 : vector<4x256xf32>
      %cst_66 = arith.constant 6.000000e+00 : f32
      %200 = vector.broadcast %cst_66 : f32 to vector<4x256xf32>
      %201 = arith.subf %199, %200 : vector<4x256xf32>
      %202 = tpu.concatenate %201, %19 in 0 : vector<4x256xf32>, vector<4x256xf32> -> vector<8x256xf32>
      %203 = vector.broadcast %51 : f32 to vector<8x256xf32>
      %204 = arith.mulf %203, %arg12 : vector<8x256xf32>
      %205 = vector.broadcast %53 : f32 to vector<8x256xf32>
      %206 = arith.mulf %205, %49 : vector<8x256xf32>
      %207 = arith.subf %204, %206 : vector<8x256xf32>
      %208 = vector.broadcast %55 : f32 to vector<8x256xf32>
      %209 = arith.mulf %208, %202 : vector<8x256xf32>
      %210 = arith.addf %207, %209 : vector<8x256xf32>
      scf.yield %210 : vector<8x256xf32>
    }
    %c8_i32_13 = arith.constant 8 : i32
    %23 = vector.extract_strided_slice %22 {offsets = [0, 0], sizes = [1, 256], strides = [1, 1]} : vector<8x256xf32> to vector<1x256xf32>
    %cst_14 = arith.constant 2.000000e-01 : f32
    %24 = vector.broadcast %cst_14 : f32 to vector<1x256xf32>
    %25 = arith.mulf %23, %24 : vector<1x256xf32>
    %cst_15 = arith.constant 5.000000e-01 : f32
    %26 = vector.broadcast %cst_15 : f32 to vector<1x256xf32>
    %27 = arith.addf %25, %26 : vector<1x256xf32>
    %c0_16 = arith.constant 0 : index
    %c0_17 = arith.constant 0 : index
    %28 = vector.load %arg10[%c0_16, %c0_17] : memref<1x256xf32, #tpu.memory_space<vmem>>, vector<1x256xf32>
    tpu.vector_store %arg10[%c0_16, %c0_17], %27 {strides = array<i32>} : memref<1x256xf32, #tpu.memory_space<vmem>>, vector<1x256xf32>,
    return
  }
  func.func @transform_0(%arg0: i32, %arg1: memref<3x8xf32, #tpu.memory_space<smem>>, %arg2: memref<1xi32, #tpu.memory_space<smem>>) -> (i32, i32) {
    %c0_i32 = arith.constant 0 : i32
    %c0_i32_0 = arith.constant 0 : i32
    return %c0_i32, %arg0 : i32, i32
  }
  func.func @transform_1(%arg0: i32, %arg1: memref<3x8xf32, #tpu.memory_space<smem>>, %arg2: memref<1xi32, #tpu.memory_space<smem>>) -> (i32, i32) {
    %c0_i32 = arith.constant 0 : i32
    %c0_i32_0 = arith.constant 0 : i32
    return %c0_i32, %arg0 : i32, i32
  }
  func.func @transform_2(%arg0: i32, %arg1: memref<3x8xf32, #tpu.memory_space<smem>>, %arg2: memref<1xi32, #tpu.memory_space<smem>>) -> (i32, i32) {
    %c0_i32 = arith.constant 0 : i32
    %c0_i32_0 = arith.constant 0 : i32
    %c0_i32_1 = arith.constant 0 : i32
    return %c0_i32, %c0_i32_0 : i32, i32
  }
  func.func @transform_3(%arg0: i32, %arg1: memref<3x8xf32, #tpu.memory_space<smem>>, %arg2: memref<1xi32, #tpu.memory_space<smem>>) -> (i32, i32) {
    %c0_i32 = arith.constant 0 : i32
    %c0_i32_0 = arith.constant 0 : i32
    %c0_i32_1 = arith.constant 0 : i32
    return %c0_i32, %c0_i32_0 : i32, i32
  }
  func.func @transform_4(%arg0: i32, %arg1: memref<3x8xf32, #tpu.memory_space<smem>>, %arg2: memref<1xi32, #tpu.memory_space<smem>>) -> (i32, i32, i32) {
    %c0_i32 = arith.constant 0 : i32
    %c0_i32_0 = arith.constant 0 : i32
    %c0_i32_1 = arith.constant 0 : i32
    %c0_i32_2 = arith.constant 0 : i32
    return %c0_i32, %c0_i32_0, %c0_i32_1 : i32, i32, i32
  }
  func.func @transform_5(%arg0: i32, %arg1: memref<3x8xf32, #tpu.memory_space<smem>>, %arg2: memref<1xi32, #tpu.memory_space<smem>>) -> (i32, i32) {
    %c0_i32 = arith.constant 0 : i32
    %c0_i32_0 = arith.constant 0 : i32
    %c0_i32_1 = arith.constant 0 : i32
    return %c0_i32, %c0_i32_0 : i32, i32
  }
  func.func @transform_6(%arg0: i32, %arg1: memref<3x8xf32, #tpu.memory_space<smem>>, %arg2: memref<1xi32, #tpu.memory_space<smem>>) -> (i32, i32) {
    %c0_i32 = arith.constant 0 : i32
    %c0_i32_0 = arith.constant 0 : i32
    %c0_i32_1 = arith.constant 0 : i32
    return %c0_i32, %c0_i32_0 : i32, i32
  }
  func.func @transform_7(%arg0: i32, %arg1: memref<3x8xf32, #tpu.memory_space<smem>>, %arg2: memref<1xi32, #tpu.memory_space<smem>>) -> (i32, i32) {
    %c0_i32 = arith.constant 0 : i32
    %c0_i32_0 = arith.constant 0 : i32
    return %c0_i32, %arg0 : i32, i32
  }
}

</mosaic_0001>

<llo_original>
// kernel: tpu_custom_call.1
$region0: #{tpu_custom_call.1}
  #allocation0 [shape = 'u32[]', space=smem, size = 0x4, offset = 0x4, fixed_abs, tag = 'smem constant byte address 0x4 - core index']
  #allocation1 [shape = 'u32[144,128]{1,0:T(1,128)}', space=vmem, size = 0x12000, scoped, tag = 'internal scratch']
  #allocation2 [shape = 's32[1]{0}', space=sflag, size = 0x4, scoped, tag = 'scoped memory for tpu_custom_call.1']
  #allocation3 [shape = 'u8[2048]{0}', space=smem, size = 0x800, scoped, tag = 'prefetched SMEM operand 0']
  #allocation4 [shape = 's32[1]{0:T(128)S(6)}', space=smem, size = 0x200, scoped, tag = 'prefetched SMEM operand 1']
  %s0 = inlined_call_operand.vmem [shape: f32[3,8], index: 0, kind: input, shape index: {}]
  %s1 = inlined_call_operand.<no memory space> [shape: s32[1], index: 1, kind: input, shape index: {}]
  %s2 = inlined_call_operand.vmem [shape: f32[8,512], index: 2, kind: input, shape index: {}]
  %s3 = inlined_call_operand.vmem [shape: f32[8,512], index: 3, kind: input, shape index: {}]
  %s4 = inlined_call_operand.vmem [shape: bf16[32,8], index: 4, kind: input, shape index: {}]
  %s5 = inlined_call_operand.vmem [shape: bf16[32,8], index: 5, kind: input, shape index: {}]
  %s6 = inlined_call_operand.vmem [shape: f32[8,32,1], index: 6, kind: input, shape index: {}]
  %s7 = inlined_call_operand.vmem [shape: bf16[8,32], index: 7, kind: input, shape index: {}]
  %s8 = inlined_call_operand.vmem [shape: f32[8,1], index: 8, kind: input, shape index: {}]
  %s9 = inlined_call_operand.hbm [shape: f32[1,512], index: 9, kind: output, shape index: {}]
  %s10 = sld [smem:[#allocation0]]
  $region68: #{tpu_custom_call.1} parent=0
    _
  %s12 = ssub.s32 1, %s10
  %s13 = scalar_select 0, %s12, %s10
  %s14 = sshll.u32 %s0, 4
  %s15 = int_to_ptr.vmem [resolvable:$true] %s14
  %17 = dma.vmem_to_smem %s15, 64, [#allocation3], [#allocation2]
  %18 = sst [smem:[#allocation4]] %s1
  %19 = dma.done [#allocation2], 64
  %20 = sfence
  $region1: #{tpu_custom_call.1} parent=0
    #allocation5 [shape = 'u8[2048]{0}', space=vmem, size = 0x800, scoped, tag = 'output window, operand 0']
    #allocation6 [shape = 's32[2]{0}', space=sflag, size = 0x8, scoped, tag = 'scoped memory for tpu_custom_call.1']
    %21 = vsyncpa [#allocation6], 0
    %s22 = scalar_lea.sflag [#allocation6], 1
    %23 = vsyncpa %s22, 0
    loop: start=0, step=1, limit=4
    $region2: #{tpu_custom_call.1} parent=1 // loop_pre_header
      _
    $region3: #{tpu_custom_call.1} parent=1 // loop_header
      %s25 = sphi 0, %s29
      %p26 = scmp.ge.s32.totalorder %s25, 4
      %s35 = sphi 0, %s37
      %s38 = sphi 0, %s35
      %s39 = sphi 0, %s38
      %s55 = sphi 0, %s39
      %s61 = sphi 0, %s63
      %s64 = sphi 0, %s61
      %s65 = sphi 0, %s64
      %s81 = sphi 0, %s65
      %s85 = sphi 0, %s85
      %s87 = sphi 0, %s85
      %s88 = sphi 0, %s87
      %s102 = sphi 0, %s88
      %s106 = sphi 0, %s106
      %s108 = sphi 0, %s106
      %s109 = sphi 0, %s108
      %s123 = sphi 0, %s109
      %s127 = sphi 0, %s127
      %s129 = sphi 0, %s127
      %s130 = sphi 0, %s129
      %s144 = sphi 0, %s130
      %s148 = sphi 0, %s148
      %s150 = sphi 0, %s148
      %s151 = sphi 0, %s150
      %s165 = sphi 0, %s151
      %s169 = sphi 0, %s169
      %s171 = sphi 0, %s169
      %s172 = sphi 0, %s171
      %s186 = sphi 0, %s172
      %s192 = sphi 0, %s194
      %s195 = sphi 0, %s192
      %s196 = sphi 0, %s195
      %s212 = sphi 0, %s196
    $region4: #{tpu_custom_call.1} parent=1 // loop_header_branch
      %28 = sbr.rel (%p26) target = $region8
    $region5: #{tpu_custom_call.1} parent=1 // loop_body
      %s30 = ssub.s32 %s25, 1
      %s31 = ssub.s32 %s25, 2
      %s32 = sadd.s32 %s25, 1
      %s33 = ssub.s32 %s25, %s32
      %p34 = scmp.eq.s32.totalorder %s33, 0
      %s36 = sadd.s32 %s35, 1
      %s37 = scalar_select %p34, %s35, %s36
      %p40 = pneg %p34
      %p41 = scmp.eq.s32.totalorder %s25, 1
      %p42 = por %p40, %p41
      %p43 = scmp.ne.s32.totalorder %s35, %s38
      %p44 = scmp.eq.s32.totalorder %s25, 0
      %p45 = por %p43, %p44
      %p46 = scmp.ne.s32.totalorder %s35, %s38
      %p47 = scmp.eq.s32.totalorder %s30, 1
      %p48 = por %p46, %p47
      %p49 = scmp.ne.s32.totalorder %s38, %s39
      %p50 = scmp.eq.s32.totalorder %s30, 0
      %p51 = por %p49, %p50
      %p52 = scmp.ne.s32.totalorder %s38, %s39
      %p53 = scmp.eq.s32.totalorder %s31, 1
      %p54 = por %p52, %p53
      %p56 = scmp.ne.s32.totalorder %s39, %s55
      %p57 = scmp.eq.s32.totalorder %s31, 0
      %p58 = por %p56, %p57
      %s59 = ssub.s32 %s25, %s32
      %p60 = scmp.eq.s32.totalorder %s59, 0
      %s62 = sadd.s32 %s61, 1
      %s63 = scalar_select %p60, %s61, %s62
      %p66 = pneg %p60
      %p67 = scmp.eq.s32.totalorder %s25, 1
      %p68 = por %p66, %p67
      %p69 = scmp.ne.s32.totalorder %s61, %s64
      %p70 = scmp.eq.s32.totalorder %s25, 0
      %p71 = por %p69, %p70
      %p72 = scmp.ne.s32.totalorder %s61, %s64
      %p73 = scmp.eq.s32.totalorder %s30, 1
      %p74 = por %p72, %p73
      %p75 = scmp.ne.s32.totalorder %s64, %s65
      %p76 = scmp.eq.s32.totalorder %s30, 0
      %p77 = por %p75, %p76
      %p78 = scmp.ne.s32.totalorder %s64, %s65
      %p79 = scmp.eq.s32.totalorder %s31, 1
      %p80 = por %p78, %p79
      %p82 = scmp.ne.s32.totalorder %s65, %s81
      %p83 = scmp.eq.s32.totalorder %s31, 0
      %p84 = por %p82, %p83
      %s86 = sadd.s32 %s85, 1
      %p89 = scmp.eq.s32.totalorder %s25, 1
      %p90 = scmp.ne.s32.totalorder %s85, %s87
      %p91 = scmp.eq.s32.totalorder %s25, 0
      %p92 = por %p90, %p91
      %p93 = scmp.ne.s32.totalorder %s85, %s87
      %p94 = scmp.eq.s32.totalorder %s30, 1
      %p95 = por %p93, %p94
      %p96 = scmp.ne.s32.totalorder %s87, %s88
      %p97 = scmp.eq.s32.totalorder %s30, 0
      %p98 = por %p96, %p97
      %p99 = scmp.ne.s32.totalorder %s87, %s88
      %p100 = scmp.eq.s32.totalorder %s31, 1
      %p101 = por %p99, %p100
      %p103 = scmp.ne.s32.totalorder %s88, %s102
      %p104 = scmp.eq.s32.totalorder %s31, 0
      %p105 = por %p103, %p104
      %s107 = sadd.s32 %s106, 1
      %p110 = scmp.eq.s32.totalorder %s25, 1
      %p111 = scmp.ne.s32.totalorder %s106, %s108
      %p112 = scmp.eq.s32.totalorder %s25, 0
      %p113 = por %p111, %p112
      %p114 = scmp.ne.s32.totalorder %s106, %s108
      %p115 = scmp.eq.s32.totalorder %s30, 1
      %p116 = por %p114, %p115
      %p117 = scmp.ne.s32.totalorder %s108, %s109
      %p118 = scmp.eq.s32.totalorder %s30, 0
      %p119 = por %p117, %p118
      %p120 = scmp.ne.s32.totalorder %s108, %s109
      %p121 = scmp.eq.s32.totalorder %s31, 1
      %p122 = por %p120, %p121
      %p124 = scmp.ne.s32.totalorder %s109, %s123
      %p125 = scmp.eq.s32.totalorder %s31, 0
      %p126 = por %p124, %p125
      %s128 = sadd.s32 %s127, 1
      %p131 = scmp.eq.s32.totalorder %s25, 1
      %p132 = scmp.ne.s32.totalorder %s127, %s129
      %p133 = scmp.eq.s32.totalorder %s25, 0
      %p134 = por %p132, %p133
      %p135 = scmp.ne.s32.totalorder %s127, %s129
      %p136 = scmp.eq.s32.totalorder %s30, 1
      %p137 = por %p135, %p136
      %p138 = scmp.ne.s32.totalorder %s129, %s130
      %p139 = scmp.eq.s32.totalorder %s30, 0
      %p140 = por %p138, %p139
      %p141 = scmp.ne.s32.totalorder %s129, %s130
      %p142 = scmp.eq.s32.totalorder %s31, 1
      %p143 = por %p141, %p142
      %p145 = scmp.ne.s32.totalorder %s130, %s144
      %p146 = scmp.eq.s32.totalorder %s31, 0
      %p147 = por %p145, %p146
      %s149 = sadd.s32 %s148, 1
      %p152 = scmp.eq.s32.totalorder %s25, 1
      %p153 = scmp.ne.s32.totalorder %s148, %s150
      %p154 = scmp.eq.s32.totalorder %s25, 0
      %p155 = por %p153, %p154
      %p156 = scmp.ne.s32.totalorder %s148, %s150
      %p157 = scmp.eq.s32.totalorder %s30, 1
      %p158 = por %p156, %p157
      %p159 = scmp.ne.s32.totalorder %s150, %s151
      %p160 = scmp.eq.s32.totalorder %s30, 0
      %p161 = por %p159, %p160
      %p162 = scmp.ne.s32.totalorder %s150, %s151
      %p163 = scmp.eq.s32.totalorder %s31, 1
      %p164 = por %p162, %p163
      %p166 = scmp.ne.s32.totalorder %s151, %s165
      %p167 = scmp.eq.s32.totalorder %s31, 0
      %p168 = por %p166, %p167
      %s170 = sadd.s32 %s169, 1
      %p173 = scmp.eq.s32.totalorder %s25, 1
      %p174 = scmp.ne.s32.totalorder %s169, %s171
      %p175 = scmp.eq.s32.totalorder %s25, 0
      %p176 = por %p174, %p175
      %p177 = scmp.ne.s32.totalorder %s169, %s171
      %p178 = scmp.eq.s32.totalorder %s30, 1
      %p179 = por %p177, %p178
      %p180 = scmp.ne.s32.totalorder %s171, %s172
      %p181 = scmp.eq.s32.totalorder %s30, 0
      %p182 = por %p180, %p181
      %p183 = scmp.ne.s32.totalorder %s171, %s172
      %p184 = scmp.eq.s32.totalorder %s31, 1
      %p185 = por %p183, %p184
      %p187 = scmp.ne.s32.totalorder %s172, %s186
      %p188 = scmp.eq.s32.totalorder %s31, 0
      %p189 = por %p187, %p188
      %s190 = ssub.s32 %s25, %s32
      %p191 = scmp.eq.s32.totalorder %s190, 0
      %s193 = sadd.s32 %s192, 1
      %s194 = scalar_select %p191, %s192, %s193
      %p197 = pneg %p191
      %p198 = scmp.eq.s32.totalorder %s25, 1
      %p199 = por %p197, %p198
      %p200 = scmp.ne.s32.totalorder %s192, %s195
      %p201 = scmp.eq.s32.totalorder %s25, 0
      %p202 = por %p200, %p201
      %p203 = scmp.ne.s32.totalorder %s192, %s195
      %p204 = scmp.eq.s32.totalorder %s30, 1
      %p205 = por %p203, %p204
      %p206 = scmp.ne.s32.totalorder %s195, %s196
      %p207 = scmp.eq.s32.totalorder %s30, 0
      %p208 = por %p206, %p207
      %p209 = scmp.ne.s32.totalorder %s195, %s196
      %p210 = scmp.eq.s32.totalorder %s31, 1
      %p211 = por %p209, %p210
      %p213 = scmp.ne.s32.totalorder %s196, %s212
      %p214 = scmp.eq.s32.totalorder %s31, 0
      %p215 = por %p213, %p214
      %p216 = scmp.le.s32.totalorder 1, %s25
      %p217 = scmp.lt.s32.totalorder %s25, 3
      %p218 = pnand %p216, %p217
      %p219 = pneg %p218
      // Predicated region
      $region9: #{tpu_custom_call.1} parent=5 // pred_check
        _
      $region10: #{tpu_custom_call.1} parent=5 // pred_check_branch
        %221 = sbr.rel (%p218) target = $region12
      $region11: #{tpu_custom_call.1} parent=5 // pred_region
        %s222 = ssub.s32 %s25, 1
        // Predicated region
        $region13: #{tpu_custom_call.1} parent=11 // pred_check
          %p223 = pneg %p98
        $region14: #{tpu_custom_call.1} parent=11 // pred_check_branch
          %225 = sbr.rel (%p223) target = $region16
        $region15: #{tpu_custom_call.1} parent=11 // pred_region
          _
        $region16: #{tpu_custom_call.1} parent=11 // pred_fallthru
          _
        // Predicated region
        $region17: #{tpu_custom_call.1} parent=11 // pred_check
          %p226 = pneg %p119
        $region18: #{tpu_custom_call.1} parent=11 // pred_check_branch
          %228 = sbr.rel (%p226) target = $region20
        $region19: #{tpu_custom_call.1} parent=11 // pred_region
          _
        $region20: #{tpu_custom_call.1} parent=11 // pred_fallthru
          _
        // Predicated region
        $region21: #{tpu_custom_call.1} parent=11 // pred_check
          %p229 = pneg %p140
        $region22: #{tpu_custom_call.1} parent=11 // pred_check_branch
          %231 = sbr.rel (%p229) target = $region24
        $region23: #{tpu_custom_call.1} parent=11 // pred_region
          _
        $region24: #{tpu_custom_call.1} parent=11 // pred_fallthru
          _
        // Predicated region
        $region25: #{tpu_custom_call.1} parent=11 // pred_check
          %p232 = pneg %p161
        $region26: #{tpu_custom_call.1} parent=11 // pred_check_branch
          %234 = sbr.rel (%p232) target = $region28
        $region27: #{tpu_custom_call.1} parent=11 // pred_region
          _
        $region28: #{tpu_custom_call.1} parent=11 // pred_fallthru
          _
        // Predicated region
        $region29: #{tpu_custom_call.1} parent=11 // pred_check
          %p235 = pneg %p182
        $region30: #{tpu_custom_call.1} parent=11 // pred_check_branch
          %237 = sbr.rel (%p235) target = $region32
        $region31: #{tpu_custom_call.1} parent=11 // pred_region
          _
        $region32: #{tpu_custom_call.1} parent=11 // pred_fallthru
          _
      $region12: #{tpu_custom_call.1} parent=5 // pred_fallthru
        _
      %p238 = scmp.lt.s32.totalorder %s25, 2
      // Predicated region
      $region33: #{tpu_custom_call.1} parent=5 // pred_check
        %p239 = pneg %p238
      $region34: #{tpu_custom_call.1} parent=5 // pred_check_branch
        %241 = sbr.rel (%p239) target = $region36
      $region35: #{tpu_custom_call.1} parent=5 // pred_region
        // Predicated region
        $region37: #{tpu_custom_call.1} parent=35 // pred_check
          %p242 = pneg %p45
        $region38: #{tpu_custom_call.1} parent=35 // pred_check_branch
          %244 = sbr.rel (%p242) target = $region40
        $region39: #{tpu_custom_call.1} parent=35 // pred_region
          %s245 = smul.u32 2, %s25
          %p246 = scmp.lt.s32.totalorder %s245, 3
          %s247 = scalar_select %p246, %s245, 3
          %s248 = smul.addr %s247, 8
          %s249 = scalar_lea.vmem %s2, %s248
          %s250 = smul.u32 2, %s25
        $region40: #{tpu_custom_call.1} parent=35 // pred_fallthru
          _
        // Predicated region
        $region41: #{tpu_custom_call.1} parent=35 // pred_check
          %p251 = pneg %p71
        $region42: #{tpu_custom_call.1} parent=35 // pred_check_branch
          %253 = sbr.rel (%p251) target = $region44
        $region43: #{tpu_custom_call.1} parent=35 // pred_region
          %s254 = smul.u32 2, %s25
          %p255 = scmp.lt.s32.totalorder %s254, 3
          %s256 = scalar_select %p255, %s254, 3
          %s257 = smul.addr %s256, 8
          %s258 = scalar_lea.vmem %s3, %s257
          %s259 = smul.u32 2, %s25
        $region44: #{tpu_custom_call.1} parent=35 // pred_fallthru
          _
      $region36: #{tpu_custom_call.1} parent=5 // pred_fallthru
        _
      %p260 = scmp.le.s32.totalorder 1, %s25
      %p261 = scmp.lt.s32.totalorder %s25, 3
      %p262 = pnand %p260, %p261
      %p263 = pneg %p262
      // Predicated region
      $region45: #{tpu_custom_call.1} parent=5 // pred_check
        _
      $region46: #{tpu_custom_call.1} parent=5 // pred_check_branch
        %265 = sbr.rel (%p262) target = $region48
      $region47: #{tpu_custom_call.1} parent=5 // pred_region
        %s266 = ssub.s32 %s25, 1
        %s267 = smul.u32 2, %s30
        %p268 = scmp.lt.s32.totalorder %s267, 3
        %s269 = scalar_select %p268, %s267, 3
        %s270 = smul.addr %s269, 8
        %s271 = scalar_lea.vmem %s2, %s270
        %p272 = pneg %p51
        %p273 = pneg %p48
        %s274 = smul.u32 2, %s30
        %p275 = scmp.lt.s32.totalorder %s274, 3
        %s276 = scalar_select %p275, %s274, 3
        %s277 = smul.addr %s276, 8
        %s278 = scalar_lea.vmem %s3, %s277
        %p279 = pneg %p77
        %p280 = pneg %p74
        %p281 = pneg %p98
        %p282 = pneg %p95
        %p283 = pneg %p119
        %p284 = pneg %p116
        %p285 = pneg %p140
        %p286 = pneg %p137
        %p287 = pneg %p161
        %p288 = pneg %p158
        %p289 = pneg %p182
        %p290 = pneg %p179
        %p291 = pneg %p208
        %p292 = pneg %p205
        %s293 = sand.u32 %s195, 1
        %s294 = scalar_lea.sflag [#allocation6], %s293
        %s295 = sand.u32 %s195, 1
        %s296 = smul.addr %s295, 2
        %s297 = scalar_lea.vmem [#allocation5], %s296
        %s298 = smul.u32 2, %s30
        %p299 = scmp.lt.s32.totalorder %s298, 3
        %s300 = scalar_select %p299, %s298, 3
        %s301 = smul.addr %s300, 8
        %s302 = scalar_lea.vmem %s2, %s301
        %s303 = smul.u32 2, %s30
        %s304 = smul.u32 2, %s30
        %p305 = scmp.lt.s32.totalorder %s304, 3
        %s306 = scalar_select %p305, %s304, 3
        %s307 = smul.addr %s306, 8
        %s308 = scalar_lea.vmem %s3, %s307
        %s309 = smul.u32 2, %s30
        %s310 = smul.u32 2, %s30
        %v312 = vld [vmem:[%s4] sm:$0xf]
        %v313 = vld [vmem:[%s4 + $0x4] sm:$0xf]
        %v314 = vld [vmem:[%s4 + $0x8] sm:$0xf]
        %v315 = vld [vmem:[%s4 + $0xc] sm:$0xf]
        %v316 = vld [vmem:[%s7] sm:$0xf]
        %v317 = vld [vmem:[%s8] sm:$0xff]
        %v318 = vld [vmem:[%s5] sm:$0xf]
        %v319 = vld [vmem:[%s5 + $0x4] sm:$0xf]
        %v320 = vld [vmem:[%s5 + $0x8] sm:$0xf]
        %v321 = vld [vmem:[%s5 + $0xc] sm:$0xf]
        %v322 = vld [vmem:[%s308] sm:$0xff]
        %v323 = vld [vmem:[%s308 + $0x8] sm:$0xff]
        %v324 = vpack.c.bf16 %v322, %v322
        %v325 = vpack.c.bf16 %v323, %v323
        %v330 = vunpack.c.l.b16 %v318
        %v331 = vunpack.c.l.b16 %v319
        %v332 = vunpack.c.l.b16 %v320
        %v333 = vunpack.c.l.b16 %v321
        %v334 = vpack.c.b16 %v331, %v330
        %v335 = vpack.c.b16 %v333, %v332
        %vm336 = vcmask 64512
        %v338 = vsel %vm336, %v334, 0
        %v341 = vsel %vm336, %v335, 0
        %vm343 = vcmask 1043456
        %v345 = vsel %vm343, %v324, 0
        %v348 = vsel %vm343, %v325, 0
        %350 = vmatprep.subr.bf16.mxu0 0
        %351 = vmatpush1.bf16.msra.mxu0 0
        %352 = vmatprep.subr.bf16.mxu0 0
        %353 = vmatpush1.bf16.msra.mxu0 0
        %354 = vmatprep.subr.bf16.mxu0 0
        %355 = vmatpush1.bf16.msra.mxu0 0
        %356 = vmatprep.subr.bf16.mxu0 0
        %357 = vmatpush1.bf16.msra.mxu0 0
        %358 = vmatprep.subr.bf16.mxu0 0
        %359 = vmatpush1.bf16.msra.mxu0 0
        %360 = vmatprep.subr.bf16.mxu0 0
        %361 = vmatpush1.bf16.msra.mxu0 0
        %362 = vmatprep.subr.bf16.mxu0 0
        %363 = vmatpush1.bf16.msra.mxu0 0
        %364 = vmatprep.subr.bf16.mxu0 %v348
        %365 = vmatpush1.bf16.msra.mxu0 %v345
        %366 = vmatprep.subr.bf16.mxu0 0
        %367 = vmatpush2.bf16.msra.mxu0 0
        %368 = vmatprep.subr.bf16.mxu0 0
        %369 = vmatpush2.bf16.msra.mxu0 0
        %370 = vmatprep.subr.bf16.mxu0 0
        %371 = vmatpush2.bf16.msra.mxu0 0
        %372 = vmatprep.subr.bf16.mxu0 0
        %373 = vmatpush2.bf16.msra.mxu0 0
        %374 = vmatprep.subr.bf16.mxu0 0
        %375 = vmatpush2.bf16.msra.mxu0 0
        %376 = vmatprep.subr.bf16.mxu0 0
        %377 = vmatpush2.bf16.msra.mxu0 0
        %378 = vmatprep.subr.bf16.mxu0 0
        %379 = vmatpush2.bf16.msra.mxu0 0
        %380 = vmatprep.subr.bf16.mxu0 0
        %381 = vmatpush2.bf16.msra.mxu0 0
        %382 = vmatprep.mubr.bf16.mxu0 0
        %383 = vmatmul.mubr.bf16.gmra.mxu0 %v338
        %v384 = vpop.f32.mrf.mxu0
        %v385 = vadd.f32 0.0, %v384
        %v386 = vpop.f32.mrf.mxu0
        %v387 = vadd.f32 0.0, %v386
        %v388 = vpop.f32.mrf.mxu0
        %v389 = vadd.f32 0.0, %v388
        %v390 = vpop.f32.mrf.mxu0
        %v391 = vadd.f32 0.0, %v390
        %392 = vmatprep.mubr.bf16.mxu0 0
        %393 = vmatmul.mubr.bf16.gmra.mxu0 %v341
        %v394 = vpop.f32.mrf.mxu0
        %v395 = vadd.f32 0.0, %v394
        %v396 = vpop.f32.mrf.mxu0
        %v397 = vadd.f32 0.0, %v396
        %v398 = vpop.f32.mrf.mxu0
        %v399 = vadd.f32 0.0, %v398
        %v400 = vpop.f32.mrf.mxu0
        %v401 = vadd.f32 0.0, %v400
        %402 = vdwg.mxu0
        %s403 = sld [smem:[#allocation4]]
        %s404 = smul.u32 %s30, 2654435769
        %s405 = sadd.s32 %s403, %s404
        %v406 = vlaneseq
        %v407 = vshrl.u32 %v406, 7
        %v408 = vlaneseq
        %v409 = vand.u32 %v408, 127
        %v410 = vadd.s32 %v409, 128
        %v411 = vmul.u32 %v407, 2246822519
        %v412 = vmul.u32 %v409, 3266489917
        %v413 = vmul.u32 %v410, 3266489917
        %v414 = vadd.s32 %v411, %v412
        %v415 = vadd.s32 %v411, %v413
        %v416 = vstv %s405
        %v417 = vadd.s32 %v414, %v416
        %v418 = vadd.s32 %v415, %v416
        %v419 = vld [vmem:[%s302] sm:$0xff]
        %v420 = vld [vmem:[%s302 + $0x8] sm:$0xff]
        loop: start=0, step=1, limit=8
        $region49: #{tpu_custom_call.1} parent=47 // loop_pre_header
          _
        $region50: #{tpu_custom_call.1} parent=47 // loop_header
          %s422 = sphi 0, %s426
          %p423 = scmp.ge.s32.totalorder %s422, 8
          %v427 = vphi %v419, %v865
          %v428 = vphi %v420, %v866
        $region51: #{tpu_custom_call.1} parent=47 // loop_header_branch
          %425 = sbr.rel (%p423) target = $region55
        $region52: #{tpu_custom_call.1} parent=47 // loop_body
          %s429 = ssub.s32 7, %s422
          %v430 = vpack.c.bf16 %v427, %v427
          %v431 = vpack.c.bf16 %v428, %v428
          %v436 = vunpack.c.l.b16 %v312
          %v437 = vunpack.c.l.b16 %v313
          %v438 = vunpack.c.l.b16 %v314
          %v439 = vunpack.c.l.b16 %v315
          %v440 = vpack.c.b16 %v437, %v436
          %v441 = vpack.c.b16 %v439, %v438
          %v443 = vsel %vm336, %v440, 0
          %v446 = vsel %vm336, %v441, 0
          %v449 = vsel %vm343, %v430, 0
          %v452 = vsel %vm343, %v431, 0
          %454 = vmatprep.subr.bf16.mxu0 0
          %455 = vmatpush1.bf16.msra.mxu0 0
          %456 = vmatprep.subr.bf16.mxu0 0
          %457 = vmatpush1.bf16.msra.mxu0 0
          %458 = vmatprep.subr.bf16.mxu0 0
          %459 = vmatpush1.bf16.msra.mxu0 0
          %460 = vmatprep.subr.bf16.mxu0 0
          %461 = vmatpush1.bf16.msra.mxu0 0
          %462 = vmatprep.subr.bf16.mxu0 0
          %463 = vmatpush1.bf16.msra.mxu0 0
          %464 = vmatprep.subr.bf16.mxu0 0
          %465 = vmatpush1.bf16.msra.mxu0 0
          %466 = vmatprep.subr.bf16.mxu0 0
          %467 = vmatpush1.bf16.msra.mxu0 0
          %468 = vmatprep.subr.bf16.mxu0 %v452
          %469 = vmatpush1.bf16.msra.mxu0 %v449
          %470 = vmatprep.subr.bf16.mxu0 0
          %471 = vmatpush2.bf16.msra.mxu0 0
          %472 = vmatprep.subr.bf16.mxu0 0
          %473 = vmatpush2.bf16.msra.mxu0 0
          %474 = vmatprep.subr.bf16.mxu0 0
          %475 = vmatpush2.bf16.msra.mxu0 0
          %476 = vmatprep.subr.bf16.mxu0 0
          %477 = vmatpush2.bf16.msra.mxu0 0
          %478 = vmatprep.subr.bf16.mxu0 0
          %479 = vmatpush2.bf16.msra.mxu0 0
          %480 = vmatprep.subr.bf16.mxu0 0
          %481 = vmatpush2.bf16.msra.mxu0 0
          %482 = vmatprep.subr.bf16.mxu0 0
          %483 = vmatpush2.bf16.msra.mxu0 0
          %484 = vmatprep.subr.bf16.mxu0 0
          %485 = vmatpush2.bf16.msra.mxu0 0
          %486 = vmatprep.mubr.bf16.mxu0 0
          %487 = vmatmul.mubr.bf16.gmra.mxu0 %v443
          %v488 = vpop.f32.mrf.mxu0
          %v489 = vadd.f32 %v385, %v488
          %v490 = vpop.f32.mrf.mxu0
          %v491 = vadd.f32 %v387, %v490
          %v492 = vpop.f32.mrf.mxu0
          %v493 = vadd.f32 %v389, %v492
          %v494 = vpop.f32.mrf.mxu0
          %v495 = vadd.f32 %v391, %v494
          %496 = vmatprep.mubr.bf16.mxu0 0
          %497 = vmatmul.mubr.bf16.gmra.mxu0 %v446
          %v498 = vpop.f32.mrf.mxu0
          %v499 = vadd.f32 %v395, %v498
          %v500 = vpop.f32.mrf.mxu0
          %v501 = vadd.f32 %v397, %v500
          %v502 = vpop.f32.mrf.mxu0
          %v503 = vadd.f32 %v399, %v502
          %v504 = vpop.f32.mrf.mxu0
          %v505 = vadd.f32 %v401, %v504
          %506 = vdwg.mxu0
          %s507 = smul.u32 %s429, 32
          %s508 = scalar_lea.vmem %s6, %s507
          %v509 = vld [vmem:[%s508] sm:$0xff]
          %v510 = vld [vmem:[%s508 + $0x8] sm:$0xff]
          %v511 = vld [vmem:[%s508 + $0x10] sm:$0xff]
          %v512 = vld [vmem:[%s508 + $0x18] sm:$0xff]
          %514 = vset.pattern.permute.xlu0 0
          %515 = vperm.xlu0 %514, %v509
          %v516 = vpop.permute.xlu0 %515
          %519 = vset.pattern.permute.xlu0 0
          %520 = vperm.xlu0 %519, %v510
          %v521 = vpop.permute.xlu0 %520
          %524 = vset.pattern.permute.xlu0 0
          %525 = vperm.xlu0 %524, %v511
          %v526 = vpop.permute.xlu0 %525
          %529 = vset.pattern.permute.xlu0 0
          %530 = vperm.xlu0 %529, %v512
          %v531 = vpop.permute.xlu0 %530
          %v533 = vadd.f32 %v489, %v516
          %v534 = vadd.f32 %v491, %v516
          %v535 = vadd.f32 %v493, %v521
          %v536 = vadd.f32 %v495, %v521
          %v537 = vadd.f32 %v499, %v526
          %v538 = vadd.f32 %v501, %v526
          %v539 = vadd.f32 %v503, %v531
          %v540 = vadd.f32 %v505, %v531
          %v541 = vsub.f32 0.0, %v533
          %v542 = vsub.f32 0.0, %v534
          %v543 = vsub.f32 0.0, %v535
          %v544 = vsub.f32 0.0, %v536
          %v545 = vsub.f32 0.0, %v537
          %v546 = vsub.f32 0.0, %v538
          %v547 = vsub.f32 0.0, %v539
          %v548 = vsub.f32 0.0, %v540
          %v549 = vmul.f32 %v541, 1.442695
          %v550 = vpow.pop %v549
          %v551 = vmul.f32 %v542, 1.442695
          %v552 = vpow.pop %v551
          %v553 = vmul.f32 %v543, 1.442695
          %v554 = vpow.pop %v553
          %v555 = vmul.f32 %v544, 1.442695
          %v556 = vpow.pop %v555
          %v557 = vmul.f32 %v545, 1.442695
          %v558 = vpow.pop %v557
          %v559 = vmul.f32 %v546, 1.442695
          %v560 = vpow.pop %v559
          %v561 = vmul.f32 %v547, 1.442695
          %v562 = vpow.pop %v561
          %v563 = vmul.f32 %v548, 1.442695
          %v564 = vpow.pop %v563
          %v565 = vadd.f32 %v550, 1.0
          %v566 = vadd.f32 %v552, 1.0
          %v567 = vadd.f32 %v554, 1.0
          %v568 = vadd.f32 %v556, 1.0
          %v569 = vadd.f32 %v558, 1.0
          %v570 = vadd.f32 %v560, 1.0
          %v571 = vadd.f32 %v562, 1.0
          %v572 = vadd.f32 %v564, 1.0
          %v573 = vrcp.pop %v565
          %v574 = vmul.f32 1.0, %v573
          %v575 = vrcp.pop %v566
          %v576 = vmul.f32 1.0, %v575
          %v577 = vrcp.pop %v567
          %v578 = vmul.f32 1.0, %v577
          %v579 = vrcp.pop %v568
          %v580 = vmul.f32 1.0, %v579
          %v581 = vrcp.pop %v569
          %v582 = vmul.f32 1.0, %v581
          %v583 = vrcp.pop %v570
          %v584 = vmul.f32 1.0, %v583
          %v585 = vrcp.pop %v571
          %v586 = vmul.f32 1.0, %v585
          %v587 = vrcp.pop %v572
          %v588 = vmul.f32 1.0, %v587
          %v589 = vmul.f32 %v533, %v574
          %v590 = vmul.f32 %v534, %v576
          %v591 = vmul.f32 %v535, %v578
          %v592 = vmul.f32 %v536, %v580
          %v593 = vmul.f32 %v537, %v582
          %v594 = vmul.f32 %v538, %v584
          %v595 = vmul.f32 %v539, %v586
          %v596 = vmul.f32 %v540, %v588
          %v597 = vpack.c.bf16 %v591, %v589
          %v598 = vpack.c.bf16 %v592, %v590
          %v599 = vpack.c.bf16 %v595, %v593
          %v600 = vpack.c.bf16 %v596, %v594
          %602 = vset.pattern.permute.xlu0 0
          %603 = vperm.xlu0 %602, %v317
          %v604 = vpop.permute.xlu0 %603
          %vm606 = vcmask 261120
          %v608 = vsel %vm606, %v316, 0
          %610 = vmatprep.subr.bf16.mxu0 0
          %611 = vmatpush1.bf16.msra.mxu0 0
          %612 = vmatprep.subr.bf16.mxu0 0
          %613 = vmatpush1.bf16.msra.mxu0 0
          %614 = vmatprep.subr.bf16.mxu0 0
          %615 = vmatpush1.bf16.msra.mxu0 0
          %616 = vmatprep.subr.bf16.mxu0 0
          %617 = vmatpush1.bf16.msra.mxu0 0
          %618 = vmatprep.subr.bf16.mxu0 0
          %619 = vmatpush1.bf16.msra.mxu0 0
          %620 = vmatprep.subr.bf16.mxu0 0
          %621 = vmatpush1.bf16.msra.mxu0 0
          %622 = vmatprep.subr.bf16.mxu0 %v600
          %623 = vmatpush1.bf16.msra.mxu0 %v599
          %624 = vmatprep.subr.bf16.mxu0 %v598
          %625 = vmatpush1.bf16.msra.mxu0 %v597
          %626 = vmatprep.subr.bf16.mxu0 0
          %627 = vmatpush2.bf16.msra.mxu0 0
          %628 = vmatprep.subr.bf16.mxu0 0
          %629 = vmatpush2.bf16.msra.mxu0 0
          %630 = vmatprep.subr.bf16.mxu0 0
          %631 = vmatpush2.bf16.msra.mxu0 0
          %632 = vmatprep.subr.bf16.mxu0 0
          %633 = vmatpush2.bf16.msra.mxu0 0
          %634 = vmatprep.subr.bf16.mxu0 0
          %635 = vmatpush2.bf16.msra.mxu0 0
          %636 = vmatprep.subr.bf16.mxu0 0
          %637 = vmatpush2.bf16.msra.mxu0 0
          %638 = vmatprep.subr.bf16.mxu0 0
          %639 = vmatpush2.bf16.msra.mxu0 0
          %640 = vmatprep.subr.bf16.mxu0 0
          %641 = vmatpush2.bf16.msra.mxu0 0
          %642 = vmatprep.mubr.bf16.mxu0 0
          %643 = vmatmul.mubr.bf16.gmra.mxu0 %v608
          %v644 = vpop.f32.mrf.mxu0
          %v645 = vadd.f32 %v604, %v644
          %v646 = vpop.f32.mrf.mxu0
          %v647 = vadd.f32 %v604, %v646
          %v648 = vpop.f32.mrf.mxu0
          %v649 = vpop.f32.mrf.mxu0
          %650 = vdwg.mxu0
          %s651 = sld [smem:[#allocation3 + %s429]]
          %s652 = sshra.s32 %s429, 7
          %s653 = sand.u32 %s429, 127
          %s654 = sadd.s32 %s652, 1
          %s655 = smul.u32 %s654, 128
          %s656 = sshra.s32 %s429, 7
          %s657 = sand.u32 %s429, 127
          %s658 = sadd.s32 %s655, %s657
          %s659 = sld [smem:[#allocation3 + %s658]]
          %s660 = sadd.s32 %s652, 2
          %s661 = smul.u32 %s660, 128
          %s662 = sadd.s32 %s661, %s657
          %s663 = sld [smem:[#allocation3 + %s662]]
          %s664 = smul.u32 %s429, 2769414579
          %v665 = vstv %s664
          %v666 = vadd.s32 %v417, %v665
          %v667 = vadd.s32 %v418, %v665
          %v668 = vadd.s32 %v666, 2654435769
          %v669 = vadd.s32 %v667, 2654435769
          %v670 = vshrl.u32 %v668, 16
          %v671 = vshrl.u32 %v669, 16
          %v672 = vxor.u32 %v668, %v670
          %v673 = vxor.u32 %v669, %v671
          %v674 = vmul.u32 %v672, 2146121005
          %v675 = vmul.u32 %v673, 2146121005
          %v676 = vshrl.u32 %v674, 15
          %v677 = vshrl.u32 %v675, 15
          %v678 = vxor.u32 %v674, %v676
          %v679 = vxor.u32 %v675, %v677
          %v680 = vmul.u32 %v678, 2221713035
          %v681 = vmul.u32 %v679, 2221713035
          %v682 = vshrl.u32 %v680, 16
          %v683 = vshrl.u32 %v681, 16
          %v684 = vxor.u32 %v680, %v682
          %v685 = vxor.u32 %v681, %v683
          %v686 = vand.u32 %v684, 65535
          %v687 = vand.u32 %v685, 65535
          %v688 = vcvt.s32.f32 %v686
          %v689 = vcvt.s32.f32 %v687
          %v690 = vshrl.u32 %v684, 16
          %v691 = vshrl.u32 %v685, 16
          %v692 = vcvt.s32.f32 %v690
          %v693 = vcvt.s32.f32 %v691
          %v694 = vadd.f32 %v688, 0.0
          %v695 = vadd.f32 %v689, 0.0
          %v696 = vadd.f32 %v694, %v692
          %v697 = vadd.f32 %v695, %v693
          %v698 = vadd.s32 %v684, 1013904242
          %v699 = vadd.s32 %v685, 1013904242
          %v700 = vshrl.u32 %v698, 16
          %v701 = vshrl.u32 %v699, 16
          %v702 = vxor.u32 %v698, %v700
          %v703 = vxor.u32 %v699, %v701
          %v704 = vmul.u32 %v702, 2146121005
          %v705 = vmul.u32 %v703, 2146121005
          %v706 = vshrl.u32 %v704, 15
          %v707 = vshrl.u32 %v705, 15
          %v708 = vxor.u32 %v704, %v706
          %v709 = vxor.u32 %v705, %v707
          %v710 = vmul.u32 %v708, 2221713035
          %v711 = vmul.u32 %v709, 2221713035
          %v712 = vshrl.u32 %v710, 16
          %v713 = vshrl.u32 %v711, 16
          %v714 = vxor.u32 %v710, %v712
          %v715 = vxor.u32 %v711, %v713
          %v716 = vand.u32 %v714, 65535
          %v717 = vand.u32 %v715, 65535
          %v718 = vcvt.s32.f32 %v716
          %v719 = vcvt.s32.f32 %v717
          %v720 = vshrl.u32 %v714, 16
          %v721 = vshrl.u32 %v715, 16
          %v722 = vcvt.s32.f32 %v720
          %v723 = vcvt.s32.f32 %v721
          %v724 = vadd.f32 %v696, %v718
          %v725 = vadd.f32 %v697, %v719
          %v726 = vadd.f32 %v724, %v722
          %v727 = vadd.f32 %v725, %v723
          %v728 = vadd.s32 %v714, 3668340011
          %v729 = vadd.s32 %v715, 3668340011
          %v730 = vshrl.u32 %v728, 16
          %v731 = vshrl.u32 %v729, 16
          %v732 = vxor.u32 %v728, %v730
          %v733 = vxor.u32 %v729, %v731
          %v734 = vmul.u32 %v732, 2146121005
          %v735 = vmul.u32 %v733, 2146121005
          %v736 = vshrl.u32 %v734, 15
          %v737 = vshrl.u32 %v735, 15
          %v738 = vxor.u32 %v734, %v736
          %v739 = vxor.u32 %v735, %v737
          %v740 = vmul.u32 %v738, 2221713035
          %v741 = vmul.u32 %v739, 2221713035
          %v742 = vshrl.u32 %v740, 16
          %v743 = vshrl.u32 %v741, 16
          %v744 = vxor.u32 %v740, %v742
          %v745 = vxor.u32 %v741, %v743
          %v746 = vand.u32 %v744, 65535
          %v747 = vand.u32 %v745, 65535
          %v748 = vcvt.s32.f32 %v746
          %v749 = vcvt.s32.f32 %v747
          %v750 = vshrl.u32 %v744, 16
          %v751 = vshrl.u32 %v745, 16
          %v752 = vcvt.s32.f32 %v750
          %v753 = vcvt.s32.f32 %v751
          %v754 = vadd.f32 %v726, %v748
          %v755 = vadd.f32 %v727, %v749
          %v756 = vadd.f32 %v754, %v752
          %v757 = vadd.f32 %v755, %v753
          %v758 = vadd.s32 %v744, 2027808484
          %v759 = vadd.s32 %v745, 2027808484
          %v760 = vshrl.u32 %v758, 16
          %v761 = vshrl.u32 %v759, 16
          %v762 = vxor.u32 %v758, %v760
          %v763 = vxor.u32 %v759, %v761
          %v764 = vmul.u32 %v762, 2146121005
          %v765 = vmul.u32 %v763, 2146121005
          %v766 = vshrl.u32 %v764, 15
          %v767 = vshrl.u32 %v765, 15
          %v768 = vxor.u32 %v764, %v766
          %v769 = vxor.u32 %v765, %v767
          %v770 = vmul.u32 %v768, 2221713035
          %v771 = vmul.u32 %v769, 2221713035
          %v772 = vshrl.u32 %v770, 16
          %v773 = vshrl.u32 %v771, 16
          %v774 = vxor.u32 %v770, %v772
          %v775 = vxor.u32 %v771, %v773
          %v776 = vand.u32 %v774, 65535
          %v777 = vand.u32 %v775, 65535
          %v778 = vcvt.s32.f32 %v776
          %v779 = vcvt.s32.f32 %v777
          %v780 = vshrl.u32 %v774, 16
          %v781 = vshrl.u32 %v775, 16
          %v782 = vcvt.s32.f32 %v780
          %v783 = vcvt.s32.f32 %v781
          %v784 = vadd.f32 %v756, %v778
          %v785 = vadd.f32 %v757, %v779
          %v786 = vadd.f32 %v784, %v782
          %v787 = vadd.f32 %v785, %v783
          %v788 = vadd.s32 %v774, 387276957
          %v789 = vadd.s32 %v775, 387276957
          %v790 = vshrl.u32 %v788, 16
          %v791 = vshrl.u32 %v789, 16
          %v792 = vxor.u32 %v788, %v790
          %v793 = vxor.u32 %v789, %v791
          %v794 = vmul.u32 %v792, 2146121005
          %v795 = vmul.u32 %v793, 2146121005
          %v796 = vshrl.u32 %v794, 15
          %v797 = vshrl.u32 %v795, 15
          %v798 = vxor.u32 %v794, %v796
          %v799 = vxor.u32 %v795, %v797
          %v800 = vmul.u32 %v798, 2221713035
          %v801 = vmul.u32 %v799, 2221713035
          %v802 = vshrl.u32 %v800, 16
          %v803 = vshrl.u32 %v801, 16
          %v804 = vxor.u32 %v800, %v802
          %v805 = vxor.u32 %v801, %v803
          %v806 = vand.u32 %v804, 65535
          %v807 = vand.u32 %v805, 65535
          %v808 = vcvt.s32.f32 %v806
          %v809 = vcvt.s32.f32 %v807
          %v810 = vshrl.u32 %v804, 16
          %v811 = vshrl.u32 %v805, 16
          %v812 = vcvt.s32.f32 %v810
          %v813 = vcvt.s32.f32 %v811
          %v814 = vadd.f32 %v786, %v808
          %v815 = vadd.f32 %v787, %v809
          %v816 = vadd.f32 %v814, %v812
          %v817 = vadd.f32 %v815, %v813
          %v818 = vadd.s32 %v804, 3041712726
          %v819 = vadd.s32 %v805, 3041712726
          %v820 = vshrl.u32 %v818, 16
          %v821 = vshrl.u32 %v819, 16
          %v822 = vxor.u32 %v818, %v820
          %v823 = vxor.u32 %v819, %v821
          %v824 = vmul.u32 %v822, 2146121005
          %v825 = vmul.u32 %v823, 2146121005
          %v826 = vshrl.u32 %v824, 15
          %v827 = vshrl.u32 %v825, 15
          %v828 = vxor.u32 %v824, %v826
          %v829 = vxor.u32 %v825, %v827
          %v830 = vmul.u32 %v828, 2221713035
          %v831 = vmul.u32 %v829, 2221713035
          %v832 = vshrl.u32 %v830, 16
          %v833 = vshrl.u32 %v831, 16
          %v834 = vxor.u32 %v830, %v832
          %v835 = vxor.u32 %v831, %v833
          %v836 = vand.u32 %v834, 65535
          %v837 = vand.u32 %v835, 65535
          %v838 = vcvt.s32.f32 %v836
          %v839 = vcvt.s32.f32 %v837
          %v840 = vshrl.u32 %v834, 16
          %v841 = vshrl.u32 %v835, 16
          %v842 = vcvt.s32.f32 %v840
          %v843 = vcvt.s32.f32 %v841
          %v844 = vadd.f32 %v816, %v838
          %v845 = vadd.f32 %v817, %v839
          %v846 = vadd.f32 %v844, %v842
          %v847 = vadd.f32 %v845, %v843
          %v848 = vmul.f32 %v846, 1.5258789e-05
          %v849 = vmul.f32 %v847, 1.5258789e-05
          %v850 = vsub.f32 %v848, 6.0
          %v851 = vsub.f32 %v849, 6.0
          %v852 = vsel %vm343, %v850, 0.0
          %v853 = vsel %vm343, %v851, 0.0
          %v854 = vstv %s651
          %v855 = vmul.f32 %v854, %v427
          %v856 = vmul.f32 %v854, %v428
          %v857 = vstv %s659
          %v858 = vmul.f32 %v857, %v645
          %v859 = vmul.f32 %v857, %v647
          %v860 = vsub.f32 %v855, %v858
          %v861 = vsub.f32 %v856, %v859
          %v862 = vstv %s663
          %v863 = vmul.f32 %v862, %v852
          %v864 = vmul.f32 %v862, %v853
          %v865 = vadd.f32 %v860, %v863
          %v866 = vadd.f32 %v861, %v864
        $region53: #{tpu_custom_call.1} parent=47 // loop_footer
          %s426 = sadd.s32 1, %s422
        $region54: #{tpu_custom_call.1} parent=47 // loop_footer_branch
          %421 = sbr.rel target = $region50
        $region55: #{tpu_custom_call.1} parent=47 // loop_exit
          _
        %v867 = vmul.f32 %v427, 0.2
        %v868 = vmul.f32 %v428, 0.2
        %v869 = vadd.f32 %v867, 0.5
        %v870 = vadd.f32 %v868, 0.5
        %v873 = vcombine.low %v869, %v870
        %v875 = vunpack.c.l.s4 1966171168
        %v876 = vunpack.c.0.s8 %v875
        %v877 = vlaneseq
        %v878 = vshrl.u32 %v877, 7
        %v879 = vsub.s32 %v876, %v878
        %v880 = vrot.slane %v873, %v879
        %v882 = vunpack.c.l.s4 1966171168
        %v883 = vunpack.c.0.s8 %v882
        %v884 = vlaneseq
        %v885 = vshrl.u32 %v884, 7
        %v886 = vsub.s32 %v883, %v885
        %v887 = vrot.slane %v880, %v886
        %v889 = vlaneseq
        %vm890 = vcmp.ge.s32.totalorder %v889, 0
        %vm891 = vcmp.lt.s32.totalorder %v889, 256
        %vm892 = vmand %vm890, %vm891
        %893 = vst.msk [vmem:[%s297] sm:$0x3] %vm892, %v887
        %s894 = sand.u32 %s195, 1
        %s895 = scalar_lea.sflag [#allocation6], %s894
        %s896 = sand.u32 %s195, 1
        %s897 = smul.addr %s896, 2
        %s898 = scalar_lea.vmem [#allocation5], %s897
        // Predicated region
        $region56: #{tpu_custom_call.1} parent=47 // pred_check
          %p899 = pneg %p205
        $region57: #{tpu_custom_call.1} parent=47 // pred_check_branch
          %901 = sbr.rel (%p899) target = $region59
        $region58: #{tpu_custom_call.1} parent=47 // pred_region
          %s902 = smul.u32 2, %s30
          %s904 = ssub.s32 32, 32
          %905 = vsyncadd %s895, %s904
          %s906 = smul.addr %s902, 16
          %s907 = scalar_lea.hbm %s9, %s906
          %s909 = sshll.u32 %s898, 4
          %s910 = int_to_ptr.vmem [resolvable:$true] %s909
          %912 = dma.vmem_to_hbm [thread:$0]  %s910, 32, %s907, %s895
        $region59: #{tpu_custom_call.1} parent=47 // pred_fallthru
          _
      $region48: #{tpu_custom_call.1} parent=5 // pred_fallthru
        _
      %p913 = scmp.le.s32.totalorder 2, %s25
      // Predicated region
      $region60: #{tpu_custom_call.1} parent=5 // pred_check
        %p914 = pneg %p913
      $region61: #{tpu_custom_call.1} parent=5 // pred_check_branch
        %916 = sbr.rel (%p914) target = $region63
      $region62: #{tpu_custom_call.1} parent=5 // pred_region
        %s917 = ssub.s32 %s25, 2
        // Predicated region
        $region64: #{tpu_custom_call.1} parent=62 // pred_check
          %p918 = pneg %p211
        $region65: #{tpu_custom_call.1} parent=62 // pred_check_branch
          %920 = sbr.rel (%p918) target = $region67
        $region66: #{tpu_custom_call.1} parent=62 // pred_region
          %s921 = sand.u32 %s196, 1
          %s922 = scalar_lea.sflag [#allocation6], %s921
          %s923 = sand.u32 %s196, 1
          %s924 = smul.addr %s923, 2
          %s925 = scalar_lea.vmem [#allocation5], %s924
          %926 = dma.done %s922, 32
        $region67: #{tpu_custom_call.1} parent=62 // pred_fallthru
          _
      $region63: #{tpu_custom_call.1} parent=5 // pred_fallthru
        _
    $region6: #{tpu_custom_call.1} parent=1 // loop_footer
      %s29 = sadd.s32 1, %s25
    $region7: #{tpu_custom_call.1} parent=1 // loop_footer_branch
      %24 = sbr.rel target = $region3
    $region8: #{tpu_custom_call.1} parent=1 // loop_exit
      _
    %927 = vsyncpa [#allocation6], 1
    %s928 = scalar_lea.sflag [#allocation6], 1
    %929 = vsyncpa %s928, 1

</llo_original>
